<compile_context>
chip_gen: v7x
topology: tpu7x:2x2x1
jax: 0.10.0
libtpu: 0.0.40
codegen_flags: <defaults>
</compile_context>

<pallas_src>
import math

import jax
import jax.numpy as jnp
import numpy as np
from jax import lax
from jax.experimental import pallas as pl
from jax.experimental.pallas import tpu as pltpu

# ---------------- problem sizes (consistent with the module defaults) --------
BATCH = 2
SEQ = 8
INPUT_DIM = 128
HIDDEN_DIM = INPUT_DIM // 4            # 32  (module default: input_dim // 4)
OUTPUT_DIM = 64
NUM_HEADS = 8
HEAD_DIM = HIDDEN_DIM // NUM_HEADS     # 4
LANE = 128
OUT_PAD = ((OUTPUT_DIM + LANE - 1) // LANE) * LANE   # 128 (lane-dense output)
ROWS = BATCH * SEQ                     # 16  (flattened tokens)
COLS = NUM_HEADS * ROWS                # 128 (head-major score columns)

# ---------- packed params-slab row offsets (all multiples of 8) --------------
OFF_WQ = 0                             # (INPUT_DIM, HIDDEN_DIM)  q weights (pre-scaled)
OFF_WK = OFF_WQ + INPUT_DIM            # 128
OFF_WV = OFF_WK + INPUT_DIM            # 256
OFF_REP = OFF_WV + INPUT_DIM           # 384  (COLS, ROWS) stacked identities
OFF_HM = OFF_REP + COLS                # 512  (COLS, HIDDEN_DIM) head-block mask
OFF_BONES = OFF_HM + COLS              # 640  (COLS, COLS) block-diagonal ones
OFF_WOM = OFF_BONES + COLS             # 768  (HIDDEN_DIM, HIDDEN_DIM) fused attn-out @ mid
OFF_WOUT = OFF_WOM + HIDDEN_DIM        # 800  (HIDDEN_DIM, OUT_PAD) padded output proj
OFF_BMASK = OFF_WOUT + HIDDEN_DIM      # 832  (ROWS, COLS) additive cross-batch mask
OFF_BIAS = OFF_BMASK + ROWS            # 848  rows: bq_s, bk, bv, bom, bout_pad
TOTAL_ROWS = OFF_BIAS + 8              # 856  (~428 KiB f32)

_FLOPS = 2 * (3 * ROWS * INPUT_DIM * HIDDEN_DIM     # q, k, v projections
              + 2 * COLS * ROWS * HIDDEN_DIM        # k_slab / v_slab replication
              + ROWS * HIDDEN_DIM * COLS            # scores
              + ROWS * COLS * COLS                  # per-head denominators
              + ROWS * COLS * HIDDEN_DIM            # context
              + ROWS * HIDDEN_DIM * HIDDEN_DIM      # fused attn-out + mid
              + ROWS * HIDDEN_DIM * OUT_PAD)        # output projection
_BYTES = 4 * (ROWS * INPUT_DIM + TOTAL_ROWS * LANE + ROWS * OUT_PAD)


# ---------------------------- Pallas kernel ----------------------------------
def projector_kernel(x_ref, p_ref, y_ref):
    x = x_ref[...]                                           # (ROWS, INPUT_DIM)

    # fused input-proj + QKV proj; three lane-aligned matmuls (no lane slicing).
    wq = p_ref[OFF_WQ:OFF_WQ + INPUT_DIM, 0:HIDDEN_DIM]
    wk = p_ref[OFF_WK:OFF_WK + INPUT_DIM, 0:HIDDEN_DIM]
    wv = p_ref[OFF_WV:OFF_WV + INPUT_DIM, 0:HIDDEN_DIM]
    bq = p_ref[OFF_BIAS + 0:OFF_BIAS + 1, 0:HIDDEN_DIM]
    bk = p_ref[OFF_BIAS + 1:OFF_BIAS + 2, 0:HIDDEN_DIM]
    bv = p_ref[OFF_BIAS + 2:OFF_BIAS + 3, 0:HIDDEN_DIM]
    q = jnp.dot(x, wq, preferred_element_type=jnp.float32) + bq   # (ROWS, H), 1/sqrt(hd) folded
    k = jnp.dot(x, wk, preferred_element_type=jnp.float32) + bk
    v = jnp.dot(x, wv, preferred_element_type=jnp.float32) + bv

    # head-block-diagonal K / V slabs via MXU replication + precomputed f32 mask
    # (replaces the 8-way sublane concatenate + iota/where of the old kernel).
    rep = p_ref[OFF_REP:OFF_REP + COLS, 0:ROWS]              # (COLS, ROWS)
    hm = p_ref[OFF_HM:OFF_HM + COLS, 0:HIDDEN_DIM]           # (COLS, H)
    k_slab = jnp.dot(rep, k, preferred_element_type=jnp.float32) * hm
    v_slab = jnp.dot(rep, v, preferred_element_type=jnp.float32) * hm

    # all-head scores in one contraction (Mosaic folds the RHS transpose into
    # the MXU operand push, same pattern as q @ k.T in flash attention),
    # plus the preloaded additive cross-batch mask.
    scores = lax.dot_general(q, k_slab, (((1,), (1,)), ((), ())),
                             preferred_element_type=jnp.float32)   # (ROWS, COLS)
    scores = scores + p_ref[OFF_BMASK:OFF_BMASK + ROWS, 0:COLS]

    # per-(row, head) softmax. Per-row max is an overflow-safe stabilizer;
    # per-head denominators come from one block-diagonal-ones matmul.
    m = jnp.max(scores, axis=-1, keepdims=True)
    pexp = jnp.exp(scores - m)                                # (ROWS, COLS)
    bones = p_ref[OFF_BONES:OFF_BONES + COLS, 0:COLS]         # (COLS, COLS)
    denom = jnp.dot(pexp, bones, preferred_element_type=jnp.float32)
    denom = jnp.maximum(denom, 1e-30)                         # NaN guard (pathological underflow)
    r = pl.reciprocal(denom, approx=True)
    r = r * (2.0 - denom * r)                                 # one Newton step -> f32 accurate
    probs = pexp * r

    # context for all heads in one matmul (heads concatenated along lanes)
    ctx = jnp.dot(probs, v_slab, preferred_element_type=jnp.float32)   # (ROWS, H)

    # fused attn-out + mid linear, ReLU, padded (lane-dense) output projection
    wom = p_ref[OFF_WOM:OFF_WOM + HIDDEN_DIM, 0:HIDDEN_DIM]
    bom = p_ref[OFF_BIAS + 3:OFF_BIAS + 4, 0:HIDDEN_DIM]
    mid = jnp.maximum(jnp.dot(ctx, wom, preferred_element_type=jnp.float32) + bom, 0.0)
    wout = p_ref[OFF_WOUT:OFF_WOUT + HIDDEN_DIM, 0:OUT_PAD]
    bout = p_ref[OFF_BIAS + 4:OFF_BIAS + 5, 0:OUT_PAD]
    y = jnp.dot(mid, wout, preferred_element_type=jnp.float32) + bout
    y_ref[...] = y.astype(y_ref.dtype)


# --------------------------------- wrapper ------------------------------------
@jax.jit
def enhanced_projector_forward(x, params_slab):
    B, S, D_in = x.shape
    x2d = x.reshape(B * S, D_in)                   # free, contiguous reshape

    vmem = lambda: pl.BlockSpec(memory_space=pltpu.MemorySpace.VMEM)
    y_pad = pl.pallas_call(
        projector_kernel,
        out_shape=jax.ShapeDtypeStruct((B * S, OUT_PAD), jnp.float32),
        in_specs=[vmem(), vmem()],
        out_specs=vmem(),
        cost_estimate=pl.CostEstimate(flops=_FLOPS, transcendentals=ROWS * COLS,
                                      bytes_accessed=_BYTES),
    )(x2d, params_slab)

    # TODO(synk): if the consumer accepts the 128-lane padded slab, return
    # y_pad.reshape(B, S, OUT_PAD) directly and drop this narrowing copy.
    return y_pad[:, :OUTPUT_DIM].reshape(B, S, OUTPUT_DIM)


# ------------------ host-side one-time parameter fusion ----------------------
def build_params_slab(params):
    """Fuse weights algebraically and pack weights + constant masks into one
    (TOTAL_ROWS, 128) f32 slab (single DMA, 8-aligned static slices in-kernel)."""
    (w_in_t, b_in, wq_t, wk_t, wv_t, bq, bk, bv,
     wo_t, bo, w_mid_t, b_mid, w_out_t, b_out) = [np.asarray(p, np.float32) for p in params]
    scale = 1.0 / math.sqrt(HEAD_DIM)

    w_xq = (w_in_t @ wq_t) * scale                      # (D_in, H), q pre-scaled
    b_xq = (b_in @ wq_t + bq) * scale                   # (1, H)
    w_xk = w_in_t @ wk_t
    b_xk = b_in @ wk_t + bk
    w_xv = w_in_t @ wv_t
    b_xv = b_in @ wv_t + bv
    w_om = wo_t @ w_mid_t                               # fused attn-out @ mid
    b_om = bo @ w_mid_t + b_mid

    w_out_pad = np.zeros((HIDDEN_DIM, OUT_PAD), np.float32)
    w_out_pad[:, :OUTPUT_DIM] = w_out_t
    b_out_pad = np.zeros((1, OUT_PAD), np.float32)
    b_out_pad[:, :OUTPUT_DIM] = b_out

    # constant masks / replication matrices (hoisted out of the kernel)
    c = np.arange(COLS)
    rep = ((c[:, None] % ROWS) == np.arange(ROWS)[None, :]).astype(np.float32)        # (COLS, ROWS)
    hm = ((c[:, None] // ROWS) ==
          (np.arange(HIDDEN_DIM)[None, :] // HEAD_DIM)).astype(np.float32)            # (COLS, H)
    bones = ((c[:, None] // ROWS) == (c[None, :] // ROWS)).astype(np.float32)         # (COLS, COLS)
    qi = np.arange(ROWS)
    bmask = np.where((qi[:, None] // SEQ) == ((c[None, :] % ROWS) // SEQ),
                     0.0, -1e30).astype(np.float32)                                   # (ROWS, COLS)

    slab = np.zeros((TOTAL_ROWS, LANE), np.float32)
    slab[OFF_WQ:OFF_WQ + INPUT_DIM, :HIDDEN_DIM] = w_xq
    slab[OFF_WK:OFF_WK + INPUT_DIM, :HIDDEN_DIM] = w_xk
    slab[OFF_WV:OFF_WV + INPUT_DIM, :HIDDEN_DIM] = w_xv
    slab[OFF_REP:OFF_REP + COLS, :ROWS] = rep
    slab[OFF_HM:OFF_HM + COLS, :HIDDEN_DIM] = hm
    slab[OFF_BONES:OFF_BONES + COLS, :COLS] = bones
    slab[OFF_WOM:OFF_WOM + HIDDEN_DIM, :HIDDEN_DIM] = w_om
    slab[OFF_WOUT:OFF_WOUT + HIDDEN_DIM, :OUT_PAD] = w_out_pad
    slab[OFF_BMASK:OFF_BMASK + ROWS, :COLS] = bmask
    slab[OFF_BIAS + 0, :HIDDEN_DIM] = b_xq[0]
    slab[OFF_BIAS + 1, :HIDDEN_DIM] = b_xk[0]
    slab[OFF_BIAS + 2, :HIDDEN_DIM] = b_xv[0]
    slab[OFF_BIAS + 3, :HIDDEN_DIM] = b_om[0]
    slab[OFF_BIAS + 4, :OUT_PAD] = b_out_pad[0]
    return jnp.asarray(slab)


# ------------------------ pure-JAX reference (unfused) ------------------------
def reference_forward(x, params):
    (w_in_t, b_in, wq_t, wk_t, wv_t, bq, bk, bv,
     wo_t, bo, w_mid_t, b_mid, w_out_t, b_out) = params
    B, S, _ = x.shape
    h = x @ w_in_t + b_in                                    # (B, S, H)
    q = (h @ wq_t + bq).reshape(B, S, NUM_HEADS, HEAD_DIM)
    k = (h @ wk_t + bk).reshape(B, S, NUM_HEADS, HEAD_DIM)
    v = (h @ wv_t + bv).reshape(B, S, NUM_HEADS, HEAD_DIM)
    scale = 1.0 / math.sqrt(HEAD_DIM)
    s = jnp.einsum("bqnd,bknd->bnqk", q * scale, k)
    p = jax.nn.softmax(s, axis=-1)
    ctx = jnp.einsum("bnqk,bknd->bqnd", p, v).reshape(B, S, HIDDEN_DIM)
    a = ctx @ wo_t + bo
    m = jnp.maximum(a @ w_mid_t + b_mid, 0.0)
    return m @ w_out_t + b_out


# ------------------------------- parameter init -------------------------------
def make_params(key):
    ks = jax.random.split(key, 14)

    def lin(k, fan_in, fan_out):
        bound = 1.0 / math.sqrt(fan_in)
        return jax.random.uniform(k, (fan_in, fan_out), jnp.float32, -bound, bound)

    def bias(k, fan_in, fan_out):
        bound = 1.0 / math.sqrt(fan_in)
        return jax.random.uniform(k, (1, fan_out), jnp.float32, -bound, bound)

    w_in_t = lin(ks[0], INPUT_DIM, HIDDEN_DIM)
    b_in = bias(ks[1], INPUT_DIM, HIDDEN_DIM)
    wq_t = lin(ks[2], HIDDEN_DIM, HIDDEN_DIM)
    wk_t = lin(ks[3], HIDDEN_DIM, HIDDEN_DIM)
    wv_t = lin(ks[4], HIDDEN_DIM, HIDDEN_DIM)
    bq = bias(ks[5], HIDDEN_DIM, HIDDEN_DIM)
    bk = bias(ks[6], HIDDEN_DIM, HIDDEN_DIM)
    bv = bias(ks[7], HIDDEN_DIM, HIDDEN_DIM)
    wo_t = lin(ks[8], HIDDEN_DIM, HIDDEN_DIM)
    bo = bias(ks[9], HIDDEN_DIM, HIDDEN_DIM)
    w_mid_t = lin(ks[10], HIDDEN_DIM, HIDDEN_DIM)
    b_mid = bias(ks[11], HIDDEN_DIM, HIDDEN_DIM)
    w_out_t = lin(ks[12], HIDDEN_DIM, OUTPUT_DIM)
    b_out = bias(ks[13], HIDDEN_DIM, OUTPUT_DIM)

    return (w_in_t, b_in, wq_t, wk_t, wv_t, bq, bk, bv,
            wo_t, bo, w_mid_t, b_mid, w_out_t, b_out)


# ------------------------------------ main ------------------------------------
if __name__ == "__main__":
    key = jax.random.PRNGKey(0)
    kx, kp = jax.random.split(key)
    x = jax.random.normal(kx, (BATCH, SEQ, INPUT_DIM), jnp.float32)
    params = make_params(kp)
    params_slab = build_params_slab(params)        # one-time host-side fusion + packing

    y = jax.block_until_ready(enhanced_projector_forward(x, params_slab))
    y_ref = jax.block_until_ready(reference_forward(x, params))

    # Fused weights (W_in@W_qkv, W_o@W_mid) differ from the layer-by-layer
    # reference only at roundoff level.
    np.testing.assert_allclose(np.asarray(y), np.asarray(y_ref),
                               rtol=2e-4, atol=1e-4)

    print("KERNEL_OK")
</pallas_src>

<mosaic_0001>
module attributes {stable_mosaic.version = 11 : i64} {
  func.func @projector_kernel(%arg0: memref<16x128xf32, #tpu.memory_space<vmem>>, %arg1: memref<856x128xf32, #tpu.memory_space<vmem>>, %arg2: memref<16x128xf32, #tpu.memory_space<vmem>>) attributes {dimension_semantics = [], scalar_prefetch = 0 : i64, scratch_operands = 0 : i64, tpu.core_type = #tpu.core_type<tc>} {
    %c0 = arith.constant 0 : index
    %c0_0 = arith.constant 0 : index
    %0 = vector.load %arg0[%c0, %c0_0] : memref<16x128xf32, #tpu.memory_space<vmem>>, vector<16x128xf32>
    %c0_1 = arith.constant 0 : index
    %c0_2 = arith.constant 0 : index
    %1 = vector.load %arg1[%c0_1, %c0_2] : memref<856x128xf32, #tpu.memory_space<vmem>>, vector<128x32xf32>
    %c128 = arith.constant 128 : index
    %c0_3 = arith.constant 0 : index
    %2 = vector.load %arg1[%c128, %c0_3] : memref<856x128xf32, #tpu.memory_space<vmem>>, vector<128x32xf32>
    %c256 = arith.constant 256 : index
    %c0_4 = arith.constant 0 : index
    %3 = vector.load %arg1[%c256, %c0_4] : memref<856x128xf32, #tpu.memory_space<vmem>>, vector<128x32xf32>
    %c848 = arith.constant 848 : index
    %c0_5 = arith.constant 0 : index
    %4 = vector.load %arg1[%c848, %c0_5] : memref<856x128xf32, #tpu.memory_space<vmem>>, vector<1x32xf32>
    %c849 = arith.constant 849 : index
    %c0_6 = arith.constant 0 : index
    %5 = vector.load %arg1[%c849, %c0_6] : memref<856x128xf32, #tpu.memory_space<vmem>>, vector<1x32xf32>
    %c850 = arith.constant 850 : index
    %c0_7 = arith.constant 0 : index
    %6 = vector.load %arg1[%c850, %c0_7] : memref<856x128xf32, #tpu.memory_space<vmem>>, vector<1x32xf32>
    %cst = arith.constant dense<0.000000e+00> : vector<16x32xf32>
    %7 = tpu.matmul %0, %1, %cst {dimension_numbers = #tpu.dot_dimension_numbers<[1], [0], [0], [1], [0, 0, 1, 1], [], []>} : vector<16x128xf32>, vector<128x32xf32>, vector<16x32xf32> -> vector<16x32xf32>
    %8 = vector.broadcast %4 : vector<1x32xf32> to vector<16x32xf32>
    %9 = arith.addf %7, %8 : vector<16x32xf32>
    %cst_8 = arith.constant dense<0.000000e+00> : vector<16x32xf32>
    %10 = tpu.matmul %0, %2, %cst_8 {dimension_numbers = #tpu.dot_dimension_numbers<[1], [0], [0], [1], [0, 0, 1, 1], [], []>} : vector<16x128xf32>, vector<128x32xf32>, vector<16x32xf32> -> vector<16x32xf32>
    %11 = vector.broadcast %5 : vector<1x32xf32> to vector<16x32xf32>
    %12 = arith.addf %10, %11 : vector<16x32xf32>
    %cst_9 = arith.constant dense<0.000000e+00> : vector<16x32xf32>
    %13 = tpu.matmul %0, %3, %cst_9 {dimension_numbers = #tpu.dot_dimension_numbers<[1], [0], [0], [1], [0, 0, 1, 1], [], []>} : vector<16x128xf32>, vector<128x32xf32>, vector<16x32xf32> -> vector<16x32xf32>
    %14 = vector.broadcast %6 : vector<1x32xf32> to vector<16x32xf32>
    %15 = arith.addf %13, %14 : vector<16x32xf32>
    %c384 = arith.constant 384 : index
    %c0_10 = arith.constant 0 : index
    %16 = vector.load %arg1[%c384, %c0_10] : memref<856x128xf32, #tpu.memory_space<vmem>>, vector<128x16xf32>
    %c512 = arith.constant 512 : index
    %c0_11 = arith.constant 0 : index
    %17 = vector.load %arg1[%c512, %c0_11] : memref<856x128xf32, #tpu.memory_space<vmem>>, vector<128x32xf32>
    %cst_12 = arith.constant dense<0.000000e+00> : vector<128x32xf32>
    %18 = tpu.matmul %16, %12, %cst_12 {dimension_numbers = #tpu.dot_dimension_numbers<[1], [0], [0], [1], [0, 0, 1, 1], [], []>} : vector<128x16xf32>, vector<16x32xf32>, vector<128x32xf32> -> vector<128x32xf32>
    %19 = arith.mulf %18, %17 : vector<128x32xf32>
    %cst_13 = arith.constant dense<0.000000e+00> : vector<128x32xf32>
    %20 = tpu.matmul %16, %15, %cst_13 {dimension_numbers = #tpu.dot_dimension_numbers<[1], [0], [0], [1], [0, 0, 1, 1], [], []>} : vector<128x16xf32>, vector<16x32xf32>, vector<128x32xf32> -> vector<128x32xf32>
    %21 = arith.mulf %20, %17 : vector<128x32xf32>
    %cst_14 = arith.constant dense<0.000000e+00> : vector<16x128xf32>
    %22 = tpu.matmul %9, %19, %cst_14 {dimension_numbers = #tpu.dot_dimension_numbers<[1], [1], [0], [0], [0, 0, 1, 0], [], []>} : vector<16x32xf32>, vector<128x32xf32>, vector<16x128xf32> -> vector<16x128xf32>
    %c832 = arith.constant 832 : index
    %c0_15 = arith.constant 0 : index
    %23 = vector.load %arg1[%c832, %c0_15] : memref<856x128xf32, #tpu.memory_space<vmem>>, vector<16x128xf32>
    %24 = arith.addf %22, %23 : vector<16x128xf32>
    %cst_16 = arith.constant dense<0xFF800000> : vector<16xf32>
    %25 = vector.multi_reduction <maximumf>, %24, %cst_16 [1] : vector<16x128xf32> to vector<16xf32>
    %26 = vector.shape_cast %25 : vector<16xf32> to vector<16x1xf32>
    %27 = vector.broadcast %26 : vector<16x1xf32> to vector<16x128xf32>
    %28 = arith.subf %24, %27 : vector<16x128xf32>
    %29 = math.exp %28 : vector<16x128xf32>
    %c640 = arith.constant 640 : index
    %c0_17 = arith.constant 0 : index
    %30 = vector.load %arg1[%c640, %c0_17] : memref<856x128xf32, #tpu.memory_space<vmem>>, vector<128x128xf32>
    %cst_18 = arith.constant dense<0.000000e+00> : vector<16x128xf32>
    %31 = tpu.matmul %29, %30, %cst_18 {dimension_numbers = #tpu.dot_dimension_numbers<[1], [0], [0], [1], [0, 0, 1, 1], [], []>} : vector<16x128xf32>, vector<128x128xf32>, vector<16x128xf32> -> vector<16x128xf32>
    %cst_19 = arith.constant 1.000000e-30 : f32
    %32 = vector.broadcast %cst_19 : f32 to vector<16x128xf32>
    %33 = arith.maximumf %31, %32 : vector<16x128xf32>
    %34 = tpu.reciprocal %33 {approx = true} : vector<16x128xf32> -> vector<16x128xf32>
    %35 = arith.mulf %33, %34 : vector<16x128xf32>
    %cst_20 = arith.constant 2.000000e+00 : f32
    %36 = vector.broadcast %cst_20 : f32 to vector<16x128xf32>
    %37 = arith.subf %36, %35 : vector<16x128xf32>
    %38 = arith.mulf %34, %37 : vector<16x128xf32>
    %39 = arith.mulf %29, %38 : vector<16x128xf32>
    %cst_21 = arith.constant dense<0.000000e+00> : vector<16x32xf32>
    %40 = tpu.matmul %39, %21, %cst_21 {dimension_numbers = #tpu.dot_dimension_numbers<[1], [0], [0], [1], [0, 0, 1, 1], [], []>} : vector<16x128xf32>, vector<128x32xf32>, vector<16x32xf32> -> vector<16x32xf32>
    %c768 = arith.constant 768 : index
    %c0_22 = arith.constant 0 : index
    %41 = vector.load %arg1[%c768, %c0_22] : memref<856x128xf32, #tpu.memory_space<vmem>>, vector<32x32xf32>
    %c851 = arith.constant 851 : index
    %c0_23 = arith.constant 0 : index
    %42 = vector.load %arg1[%c851, %c0_23] : memref<856x128xf32, #tpu.memory_space<vmem>>, vector<1x32xf32>
    %cst_24 = arith.constant dense<0.000000e+00> : vector<16x32xf32>
    %43 = tpu.matmul %40, %41, %cst_24 {dimension_numbers = #tpu.dot_dimension_numbers<[1], [0], [0], [1], [0, 0, 1, 1], [], []>} : vector<16x32xf32>, vector<32x32xf32>, vector<16x32xf32> -> vector<16x32xf32>
    %44 = vector.broadcast %42 : vector<1x32xf32> to vector<16x32xf32>
    %45 = arith.addf %43, %44 : vector<16x32xf32>
    %cst_25 = arith.constant 0.000000e+00 : f32
    %46 = vector.broadcast %cst_25 : f32 to vector<16x32xf32>
    %47 = arith.maximumf %45, %46 : vector<16x32xf32>
    %c800 = arith.constant 800 : index
    %c0_26 = arith.constant 0 : index
    %48 = vector.load %arg1[%c800, %c0_26] : memref<856x128xf32, #tpu.memory_space<vmem>>, vector<32x128xf32>
    %c852 = arith.constant 852 : index
    %c0_27 = arith.constant 0 : index
    %49 = vector.load %arg1[%c852, %c0_27] : memref<856x128xf32, #tpu.memory_space<vmem>>, vector<1x128xf32>
    %cst_28 = arith.constant dense<0.000000e+00> : vector<16x128xf32>
    %50 = tpu.matmul %47, %48, %cst_28 {dimension_numbers = #tpu.dot_dimension_numbers<[1], [0], [0], [1], [0, 0, 1, 1], [], []>} : vector<16x32xf32>, vector<32x128xf32>, vector<16x128xf32> -> vector<16x128xf32>
    %51 = vector.broadcast %49 : vector<1x128xf32> to vector<16x128xf32>
    %52 = arith.addf %50, %51 : vector<16x128xf32>
    %c0_29 = arith.constant 0 : index
    %c0_30 = arith.constant 0 : index
    %53 = vector.load %arg2[%c0_29, %c0_30] : memref<16x128xf32, #tpu.memory_space<vmem>>, vector<16x128xf32>
    tpu.vector_store %arg2[%c0_29, %c0_30], %52 {strides = array<i32>} : memref<16x128xf32, #tpu.memory_space<vmem>>, vector<16x128xf32>,
    return
  }
}

</mosaic_0001>

<llo_original>
// kernel: enhanced_projector_forward.1
$region0: #{enhanced_projector_forward.1}
  #allocation0 [shape = 'u32[]', space=smem, size = 0x4, offset = 0x4, fixed_abs, tag = 'smem constant byte address 0x4 - core index']
  #allocation1 [shape = 'u32[144,128]{1,0:T(1,128)}', space=vmem, size = 0x12000, scoped, tag = 'internal scratch']
  %s0 = inlined_call_operand.hbm [shape: f32[16,128], index: 0, kind: input, shape index: {}]
  %s1 = inlined_call_operand.hbm [shape: f32[856,128], index: 1, kind: input, shape index: {}]
  %s2 = inlined_call_operand.vmem [shape: f32[16,128], index: 2, kind: output, shape index: {}]
  %s3 = sld [smem:[#allocation0]]
  $region26: #{enhanced_projector_forward.1} parent=0
    _
  %s5 = ssub.s32 1, %s3
  %s6 = scalar_select 0, %s5, %s3
  $region1: #{enhanced_projector_forward.1} parent=0
    #allocation2 [shape = 'u8[8192]{0}', space=vmem, size = 0x2000, scoped, tag = 'input window, operand 0, single buffered']
    #allocation3 [shape = 's32[1]{0}', space=sflag, size = 0x4, scoped, tag = 'scoped memory for enhanced_projector_forward.1']
    #allocation4 [shape = 'u8[438272]{0}', space=vmem, size = 0x6b000, scoped, tag = 'input window, operand 1, single buffered']
    #allocation5 [shape = 's32[1]{0}', space=sflag, size = 0x4, scoped, tag = 'scoped memory for enhanced_projector_forward.1']
    %7 = vsyncpa [#allocation3], 0
    %8 = vsyncpa [#allocation5], 0
    // Predicated region
    $region2: #{enhanced_projector_forward.1} parent=1 // pred_check
      _
    $region3: #{enhanced_projector_forward.1} parent=1 // pred_check_branch
      %10 = sbr.rel (0) target = $region5
    $region4: #{enhanced_projector_forward.1} parent=1 // pred_region
      %s12 = ssub.s32 256, 256
      %13 = vsyncadd [#allocation3], %s12
      %s14 = sshll.u32 [#allocation2], 4
      %s15 = int_to_ptr.vmem [resolvable:$true] %s14
      %20 = dma.hbm_to_vmem [thread:$0]  %s0, 256, %s15, [#allocation3], 128, 128, 8
    $region5: #{enhanced_projector_forward.1} parent=1 // pred_fallthru
      _
    // Predicated region
    $region6: #{enhanced_projector_forward.1} parent=1 // pred_check
      _
    $region7: #{enhanced_projector_forward.1} parent=1 // pred_check_branch
      %22 = sbr.rel (0) target = $region9
    $region8: #{enhanced_projector_forward.1} parent=1 // pred_region
      %s24 = ssub.s32 13696, 13696
      %25 = vsyncadd [#allocation5], %s24
      %s26 = sshll.u32 [#allocation4], 4
      %s27 = int_to_ptr.vmem [resolvable:$true] %s26
      %32 = dma.hbm_to_vmem [thread:$0]  %s1, 13696, %s27, [#allocation5], 128, 128, 8
    $region9: #{enhanced_projector_forward.1} parent=1 // pred_fallthru
      _
    // Predicated region
    $region10: #{enhanced_projector_forward.1} parent=1 // pred_check
      _
    $region11: #{enhanced_projector_forward.1} parent=1 // pred_check_branch
      %34 = sbr.rel (0) target = $region13
    $region12: #{enhanced_projector_forward.1} parent=1 // pred_region
      %35 = dma.done [#allocation3], 256
    $region13: #{enhanced_projector_forward.1} parent=1 // pred_fallthru
      _
    // Predicated region
    $region14: #{enhanced_projector_forward.1} parent=1 // pred_check
      _
    $region15: #{enhanced_projector_forward.1} parent=1 // pred_check_branch
      %37 = sbr.rel (0) target = $region17
    $region16: #{enhanced_projector_forward.1} parent=1 // pred_region
      %38 = dma.done [#allocation5], 13696
    $region17: #{enhanced_projector_forward.1} parent=1 // pred_fallthru
      _
    %v39 = vld [vmem:[#allocation2] sm:$0xff]
    %v40 = vld [vmem:[#allocation2 + $0x8] sm:$0xff]
    %v41 = vld [vmem:[#allocation4] sm:$0xff]
    %v42 = vld [vmem:[#allocation4 + $0x8] sm:$0xff]
    %v43 = vld [vmem:[#allocation4 + $0x10] sm:$0xff]
    %v44 = vld [vmem:[#allocation4 + $0x18] sm:$0xff]
    %v45 = vld [vmem:[#allocation4 + $0x20] sm:$0xff]
    %v46 = vld [vmem:[#allocation4 + $0x28] sm:$0xff]
    %v47 = vld [vmem:[#allocation4 + $0x30] sm:$0xff]
    %v48 = vld [vmem:[#allocation4 + $0x38] sm:$0xff]
    %v49 = vld [vmem:[#allocation4 + $0x40] sm:$0xff]
    %v50 = vld [vmem:[#allocation4 + $0x48] sm:$0xff]
    %v51 = vld [vmem:[#allocation4 + $0x50] sm:$0xff]
    %v52 = vld [vmem:[#allocation4 + $0x58] sm:$0xff]
    %v53 = vld [vmem:[#allocation4 + $0x60] sm:$0xff]
    %v54 = vld [vmem:[#allocation4 + $0x68] sm:$0xff]
    %v55 = vld [vmem:[#allocation4 + $0x70] sm:$0xff]
    %v56 = vld [vmem:[#allocation4 + $0x78] sm:$0xff]
    %v57 = vld [vmem:[#allocation4 + $0x80] sm:$0xff]
    %v58 = vld [vmem:[#allocation4 + $0x88] sm:$0xff]
    %v59 = vld [vmem:[#allocation4 + $0x90] sm:$0xff]
    %v60 = vld [vmem:[#allocation4 + $0x98] sm:$0xff]
    %v61 = vld [vmem:[#allocation4 + $0xa0] sm:$0xff]
    %v62 = vld [vmem:[#allocation4 + $0xa8] sm:$0xff]
    %v63 = vld [vmem:[#allocation4 + $0xb0] sm:$0xff]
    %v64 = vld [vmem:[#allocation4 + $0xb8] sm:$0xff]
    %v65 = vld [vmem:[#allocation4 + $0xc0] sm:$0xff]
    %v66 = vld [vmem:[#allocation4 + $0xc8] sm:$0xff]
    %v67 = vld [vmem:[#allocation4 + $0xd0] sm:$0xff]
    %v68 = vld [vmem:[#allocation4 + $0xd8] sm:$0xff]
    %v69 = vld [vmem:[#allocation4 + $0xe0] sm:$0xff]
    %v70 = vld [vmem:[#allocation4 + $0xe8] sm:$0xff]
    %v71 = vld [vmem:[#allocation4 + $0xf0] sm:$0xff]
    %v72 = vld [vmem:[#allocation4 + $0xf8] sm:$0xff]
    %v73 = vld [vmem:[#allocation4 + $0x100] sm:$0xff]
    %v74 = vld [vmem:[#allocation4 + $0x108] sm:$0xff]
    %v75 = vld [vmem:[#allocation4 + $0x110] sm:$0xff]
    %v76 = vld [vmem:[#allocation4 + $0x118] sm:$0xff]
    %v77 = vld [vmem:[#allocation4 + $0x120] sm:$0xff]
    %v78 = vld [vmem:[#allocation4 + $0x128] sm:$0xff]
    %v79 = vld [vmem:[#allocation4 + $0x130] sm:$0xff]
    %v80 = vld [vmem:[#allocation4 + $0x138] sm:$0xff]
    %v81 = vld [vmem:[#allocation4 + $0x140] sm:$0xff]
    %v82 = vld [vmem:[#allocation4 + $0x148] sm:$0xff]
    %v83 = vld [vmem:[#allocation4 + $0x150] sm:$0xff]
    %v84 = vld [vmem:[#allocation4 + $0x158] sm:$0xff]
    %v85 = vld [vmem:[#allocation4 + $0x160] sm:$0xff]
    %v86 = vld [vmem:[#allocation4 + $0x168] sm:$0xff]
    %v87 = vld [vmem:[#allocation4 + $0x170] sm:$0xff]
    %v88 = vld [vmem:[#allocation4 + $0x178] sm:$0xff]
    %v89 = vld [vmem:[#allocation4 + $0x350] sm:$0x1]
    %v90 = vld [vmem:[#allocation4 + $0x351] sm:$0x1]
    %v91 = vld [vmem:[#allocation4 + $0x352] sm:$0x1]
    %v92 = vlaneseq
    %v93 = vshrl.u32 %v92, 7
    %v94 = vsub.s32 0, %v93
    %v95 = vrot.slane %v89, %v94
    %96 = vmatprep.subr.mxu0 0.0
    %97 = vmatpush1.msra.mxu0 %v41
    %98 = vmatprep.subr.mxu0 0.0
    %99 = vmatpush1.msra.mxu0 %v42
    %100 = vmatprep.subr.mxu0 0.0
    %101 = vmatpush1.msra.mxu0 %v43
    %102 = vmatprep.subr.mxu0 0.0
    %103 = vmatpush1.msra.mxu0 %v44
    %104 = vmatprep.subr.mxu0 0.0
    %105 = vmatpush1.msra.mxu0 %v45
    %106 = vmatprep.subr.mxu0 0.0
    %107 = vmatpush1.msra.mxu0 %v46
    %108 = vmatprep.subr.mxu0 0.0
    %109 = vmatpush1.msra.mxu0 %v47
    %110 = vmatprep.subr.mxu0 0.0
    %111 = vmatpush1.msra.mxu0 %v48
    %112 = vmatprep.subr.mxu0 0.0
    %113 = vmatpush1.msra.mxu0 %v49
    %114 = vmatprep.subr.mxu0 0.0
    %115 = vmatpush1.msra.mxu0 %v50
    %116 = vmatprep.subr.mxu0 0.0
    %117 = vmatpush1.msra.mxu0 %v51
    %118 = vmatprep.subr.mxu0 0.0
    %119 = vmatpush1.msra.mxu0 %v52
    %120 = vmatprep.subr.mxu0 0.0
    %121 = vmatpush1.msra.mxu0 %v53
    %122 = vmatprep.subr.mxu0 0.0
    %123 = vmatpush1.msra.mxu0 %v54
    %124 = vmatprep.subr.mxu0 0.0
    %125 = vmatpush1.msra.mxu0 %v55
    %126 = vmatprep.subr.mxu0 0.0
    %127 = vmatpush1.msra.mxu0 %v56
    %128 = vmatprep.subr.mxu0 0.0
    %129 = vmatpush1.msra.mxu0 0.0
    %130 = vmatprep.subr.mxu0 0.0
    %131 = vmatpush1.msra.mxu0 0.0
    %132 = vmatprep.subr.mxu0 0.0
    %133 = vmatpush1.msra.mxu0 0.0
    %134 = vmatprep.subr.mxu0 0.0
    %135 = vmatpush1.msra.mxu0 0.0
    %136 = vmatprep.subr.mxu0 0.0
    %137 = vmatpush1.msra.mxu0 0.0
    %138 = vmatprep.subr.mxu0 0.0
    %139 = vmatpush1.msra.mxu0 0.0
    %140 = vmatprep.subr.mxu0 0.0
    %141 = vmatpush1.msra.mxu0 0.0
    %142 = vmatprep.subr.mxu0 0.0
    %143 = vmatpush1.msra.mxu0 0.0
    %144 = vmatprep.subr.mxu0 0.0
    %145 = vmatpush1.msra.mxu0 0.0
    %146 = vmatprep.subr.mxu0 0.0
    %147 = vmatpush1.msra.mxu0 0.0
    %148 = vmatprep.subr.mxu0 0.0
    %149 = vmatpush1.msra.mxu0 0.0
    %150 = vmatprep.subr.mxu0 0.0
    %151 = vmatpush1.msra.mxu0 0.0
    %152 = vmatprep.subr.mxu0 0.0
    %153 = vmatpush1.msra.mxu0 0.0
    %154 = vmatprep.subr.mxu0 0.0
    %155 = vmatpush1.msra.mxu0 0.0
    %156 = vmatprep.subr.mxu0 0.0
    %157 = vmatpush1.msra.mxu0 0.0
    %158 = vmatprep.subr.mxu0 0.0
    %159 = vmatpush1.msra.mxu0 0.0
    %160 = vmatprep.mubr.f32.mxu0 0.0
    %161 = vmatmul.mubr.f32.gmra.mrb[0].mxu0 %v39
    %v162 = vpop.f32.mrb[0].mxu0
    %v163 = vadd.f32 %v95, %v162
    %v164 = vpop.f32.mrb[0].mxu0
    %165 = vmatprep.mubr.f32.mxu0 0.0
    %166 = vmatmul.mubr.f32.gmra.mrb[0].mxu0 %v40
    %v167 = vpop.f32.mrb[0].mxu0
    %v168 = vadd.f32 %v95, %v167
    %v169 = vpop.f32.mrb[0].mxu0
    %170 = vdwg.mxu0
    %v171 = vlaneseq
    %v172 = vshrl.u32 %v171, 7
    %v173 = vsub.s32 0, %v172
    %v174 = vrot.slane %v90, %v173
    %175 = vmatprep.subr.mxu0 0.0
    %176 = vmatpush1.msra.mxu0 %v57
    %177 = vmatprep.subr.mxu0 0.0
    %178 = vmatpush1.msra.mxu0 %v58
    %179 = vmatprep.subr.mxu0 0.0
    %180 = vmatpush1.msra.mxu0 %v59
    %181 = vmatprep.subr.mxu0 0.0
    %182 = vmatpush1.msra.mxu0 %v60
    %183 = vmatprep.subr.mxu0 0.0
    %184 = vmatpush1.msra.mxu0 %v61
    %185 = vmatprep.subr.mxu0 0.0
    %186 = vmatpush1.msra.mxu0 %v62
    %187 = vmatprep.subr.mxu0 0.0
    %188 = vmatpush1.msra.mxu0 %v63
    %189 = vmatprep.subr.mxu0 0.0
    %190 = vmatpush1.msra.mxu0 %v64
    %191 = vmatprep.subr.mxu0 0.0
    %192 = vmatpush1.msra.mxu0 %v65
    %193 = vmatprep.subr.mxu0 0.0
    %194 = vmatpush1.msra.mxu0 %v66
    %195 = vmatprep.subr.mxu0 0.0
    %196 = vmatpush1.msra.mxu0 %v67
    %197 = vmatprep.subr.mxu0 0.0
    %198 = vmatpush1.msra.mxu0 %v68
    %199 = vmatprep.subr.mxu0 0.0
    %200 = vmatpush1.msra.mxu0 %v69
    %201 = vmatprep.subr.mxu0 0.0
    %202 = vmatpush1.msra.mxu0 %v70
    %203 = vmatprep.subr.mxu0 0.0
    %204 = vmatpush1.msra.mxu0 %v71
    %205 = vmatprep.subr.mxu0 0.0
    %206 = vmatpush1.msra.mxu0 %v72
    %207 = vmatprep.subr.mxu0 0.0
    %208 = vmatpush1.msra.mxu0 0.0
    %209 = vmatprep.subr.mxu0 0.0
    %210 = vmatpush1.msra.mxu0 0.0
    %211 = vmatprep.subr.mxu0 0.0
    %212 = vmatpush1.msra.mxu0 0.0
    %213 = vmatprep.subr.mxu0 0.0
    %214 = vmatpush1.msra.mxu0 0.0
    %215 = vmatprep.subr.mxu0 0.0
    %216 = vmatpush1.msra.mxu0 0.0
    %217 = vmatprep.subr.mxu0 0.0
    %218 = vmatpush1.msra.mxu0 0.0
    %219 = vmatprep.subr.mxu0 0.0
    %220 = vmatpush1.msra.mxu0 0.0
    %221 = vmatprep.subr.mxu0 0.0
    %222 = vmatpush1.msra.mxu0 0.0
    %223 = vmatprep.subr.mxu0 0.0
    %224 = vmatpush1.msra.mxu0 0.0
    %225 = vmatprep.subr.mxu0 0.0
    %226 = vmatpush1.msra.mxu0 0.0
    %227 = vmatprep.subr.mxu0 0.0
    %228 = vmatpush1.msra.mxu0 0.0
    %229 = vmatprep.subr.mxu0 0.0
    %230 = vmatpush1.msra.mxu0 0.0
    %231 = vmatprep.subr.mxu0 0.0
    %232 = vmatpush1.msra.mxu0 0.0
    %233 = vmatprep.subr.mxu0 0.0
    %234 = vmatpush1.msra.mxu0 0.0
    %235 = vmatprep.subr.mxu0 0.0
    %236 = vmatpush1.msra.mxu0 0.0
    %237 = vmatprep.subr.mxu0 0.0
    %238 = vmatpush1.msra.mxu0 0.0
    %239 = vmatprep.mubr.f32.mxu0 0.0
    %240 = vmatmul.mubr.f32.gmra.mrb[0].mxu0 %v39
    %v241 = vpop.f32.mrb[0].mxu0
    %v242 = vadd.f32 %v174, %v241
    %v243 = vpop.f32.mrb[0].mxu0
    %244 = vmatprep.mubr.f32.mxu0 0.0
    %245 = vmatmul.mubr.f32.gmra.mrb[0].mxu0 %v40
    %v246 = vpop.f32.mrb[0].mxu0
    %v247 = vadd.f32 %v174, %v246
    %v248 = vpop.f32.mrb[0].mxu0
    %249 = vdwg.mxu0
    %v250 = vlaneseq
    %v251 = vshrl.u32 %v250, 7
    %v252 = vsub.s32 0, %v251
    %v253 = vrot.slane %v91, %v252
    %254 = vmatprep.subr.mxu0 0.0
    %255 = vmatpush1.msra.mxu0 %v73
    %256 = vmatprep.subr.mxu0 0.0
    %257 = vmatpush1.msra.mxu0 %v74
    %258 = vmatprep.subr.mxu0 0.0
    %259 = vmatpush1.msra.mxu0 %v75
    %260 = vmatprep.subr.mxu0 0.0
    %261 = vmatpush1.msra.mxu0 %v76
    %262 = vmatprep.subr.mxu0 0.0
    %263 = vmatpush1.msra.mxu0 %v77
    %264 = vmatprep.subr.mxu0 0.0
    %265 = vmatpush1.msra.mxu0 %v78
    %266 = vmatprep.subr.mxu0 0.0
    %267 = vmatpush1.msra.mxu0 %v79
    %268 = vmatprep.subr.mxu0 0.0
    %269 = vmatpush1.msra.mxu0 %v80
    %270 = vmatprep.subr.mxu0 0.0
    %271 = vmatpush1.msra.mxu0 %v81
    %272 = vmatprep.subr.mxu0 0.0
    %273 = vmatpush1.msra.mxu0 %v82
    %274 = vmatprep.subr.mxu0 0.0
    %275 = vmatpush1.msra.mxu0 %v83
    %276 = vmatprep.subr.mxu0 0.0
    %277 = vmatpush1.msra.mxu0 %v84
    %278 = vmatprep.subr.mxu0 0.0
    %279 = vmatpush1.msra.mxu0 %v85
    %280 = vmatprep.subr.mxu0 0.0
    %281 = vmatpush1.msra.mxu0 %v86
    %282 = vmatprep.subr.mxu0 0.0
    %283 = vmatpush1.msra.mxu0 %v87
    %284 = vmatprep.subr.mxu0 0.0
    %285 = vmatpush1.msra.mxu0 %v88
    %286 = vmatprep.subr.mxu0 0.0
    %287 = vmatpush1.msra.mxu0 0.0
    %288 = vmatprep.subr.mxu0 0.0
    %289 = vmatpush1.msra.mxu0 0.0
    %290 = vmatprep.subr.mxu0 0.0
    %291 = vmatpush1.msra.mxu0 0.0
    %292 = vmatprep.subr.mxu0 0.0
    %293 = vmatpush1.msra.mxu0 0.0
    %294 = vmatprep.subr.mxu0 0.0
    %295 = vmatpush1.msra.mxu0 0.0
    %296 = vmatprep.subr.mxu0 0.0
    %297 = vmatpush1.msra.mxu0 0.0
    %298 = vmatprep.subr.mxu0 0.0
    %299 = vmatpush1.msra.mxu0 0.0
    %300 = vmatprep.subr.mxu0 0.0
    %301 = vmatpush1.msra.mxu0 0.0
    %302 = vmatprep.subr.mxu0 0.0
    %303 = vmatpush1.msra.mxu0 0.0
    %304 = vmatprep.subr.mxu0 0.0
    %305 = vmatpush1.msra.mxu0 0.0
    %306 = vmatprep.subr.mxu0 0.0
    %307 = vmatpush1.msra.mxu0 0.0
    %308 = vmatprep.subr.mxu0 0.0
    %309 = vmatpush1.msra.mxu0 0.0
    %310 = vmatprep.subr.mxu0 0.0
    %311 = vmatpush1.msra.mxu0 0.0
    %312 = vmatprep.subr.mxu0 0.0
    %313 = vmatpush1.msra.mxu0 0.0
    %314 = vmatprep.subr.mxu0 0.0
    %315 = vmatpush1.msra.mxu0 0.0
    %316 = vmatprep.subr.mxu0 0.0
    %317 = vmatpush1.msra.mxu0 0.0
    %318 = vmatprep.mubr.f32.mxu0 0.0
    %319 = vmatmul.mubr.f32.gmra.mrb[0].mxu0 %v39
    %v320 = vpop.f32.mrb[0].mxu0
    %v321 = vadd.f32 %v253, %v320
    %v322 = vpop.f32.mrb[0].mxu0
    %323 = vmatprep.mubr.f32.mxu0 0.0
    %324 = vmatmul.mubr.f32.gmra.mrb[0].mxu0 %v40
    %v325 = vpop.f32.mrb[0].mxu0
    %v326 = vadd.f32 %v253, %v325
    %v327 = vpop.f32.mrb[0].mxu0
    %328 = vdwg.mxu0
    %v329 = vld [vmem:[#allocation4 + $0x180] sm:$0xff]
    %v330 = vld [vmem:[#allocation4 + $0x188] sm:$0xff]
    %v331 = vld [vmem:[#allocation4 + $0x190] sm:$0xff]
    %v332 = vld [vmem:[#allocation4 + $0x198] sm:$0xff]
    %v333 = vld [vmem:[#allocation4 + $0x1a0] sm:$0xff]
    %v334 = vld [vmem:[#allocation4 + $0x1a8] sm:$0xff]
    %v335 = vld [vmem:[#allocation4 + $0x1b0] sm:$0xff]
    %v336 = vld [vmem:[#allocation4 + $0x1b8] sm:$0xff]
    %v337 = vld [vmem:[#allocation4 + $0x1c0] sm:$0xff]
    %v338 = vld [vmem:[#allocation4 + $0x1c8] sm:$0xff]
    %v339 = vld [vmem:[#allocation4 + $0x1d0] sm:$0xff]
    %v340 = vld [vmem:[#allocation4 + $0x1d8] sm:$0xff]
    %v341 = vld [vmem:[#allocation4 + $0x1e0] sm:$0xff]
    %v342 = vld [vmem:[#allocation4 + $0x1e8] sm:$0xff]
    %v343 = vld [vmem:[#allocation4 + $0x1f0] sm:$0xff]
    %v344 = vld [vmem:[#allocation4 + $0x1f8] sm:$0xff]
    %v345 = vld [vmem:[#allocation4 + $0x200] sm:$0xff]
    %v346 = vld [vmem:[#allocation4 + $0x208] sm:$0xff]
    %v347 = vld [vmem:[#allocation4 + $0x210] sm:$0xff]
    %v348 = vld [vmem:[#allocation4 + $0x218] sm:$0xff]
    %v349 = vld [vmem:[#allocation4 + $0x220] sm:$0xff]
    %v350 = vld [vmem:[#allocation4 + $0x228] sm:$0xff]
    %v351 = vld [vmem:[#allocation4 + $0x230] sm:$0xff]
    %v352 = vld [vmem:[#allocation4 + $0x238] sm:$0xff]
    %v353 = vld [vmem:[#allocation4 + $0x240] sm:$0xff]
    %v354 = vld [vmem:[#allocation4 + $0x248] sm:$0xff]
    %v355 = vld [vmem:[#allocation4 + $0x250] sm:$0xff]
    %v356 = vld [vmem:[#allocation4 + $0x258] sm:$0xff]
    %v357 = vld [vmem:[#allocation4 + $0x260] sm:$0xff]
    %v358 = vld [vmem:[#allocation4 + $0x268] sm:$0xff]
    %v359 = vld [vmem:[#allocation4 + $0x270] sm:$0xff]
    %v360 = vld [vmem:[#allocation4 + $0x278] sm:$0xff]
    %vm361 = vcmask 130048
    %v363 = vsel %vm361, %v329, 0
    %v366 = vsel %vm361, %v330, 0
    %v369 = vsel %vm361, %v331, 0
    %v372 = vsel %vm361, %v332, 0
    %v375 = vsel %vm361, %v333, 0
    %v378 = vsel %vm361, %v334, 0
    %v381 = vsel %vm361, %v335, 0
    %v384 = vsel %vm361, %v336, 0
    %v387 = vsel %vm361, %v337, 0
    %v390 = vsel %vm361, %v338, 0
    %v393 = vsel %vm361, %v339, 0
    %v396 = vsel %vm361, %v340, 0
    %v399 = vsel %vm361, %v341, 0
    %v402 = vsel %vm361, %v342, 0
    %v405 = vsel %vm361, %v343, 0
    %v408 = vsel %vm361, %v344, 0
    %410 = vmatprep.subr.mxu0 0.0
    %411 = vmatpush1.msra.mxu0 %v242
    %412 = vmatprep.subr.mxu0 0.0
    %413 = vmatpush1.msra.mxu0 %v247
    %414 = vmatprep.subr.mxu0 0.0
    %415 = vmatpush1.msra.mxu0 0.0
    %416 = vmatprep.subr.mxu0 0.0
    %417 = vmatpush1.msra.mxu0 0.0
    %418 = vmatprep.subr.mxu0 0.0
    %419 = vmatpush1.msra.mxu0 0.0
    %420 = vmatprep.subr.mxu0 0.0
    %421 = vmatpush1.msra.mxu0 0.0
    %422 = vmatprep.subr.mxu0 0.0
    %423 = vmatpush1.msra.mxu0 0.0
    %424 = vmatprep.subr.mxu0 0.0
    %425 = vmatpush1.msra.mxu0 0.0
    %426 = vmatprep.subr.mxu0 0.0
    %427 = vmatpush1.msra.mxu0 0.0
    %428 = vmatprep.subr.mxu0 0.0
    %429 = vmatpush1.msra.mxu0 0.0
    %430 = vmatprep.subr.mxu0 0.0
    %431 = vmatpush1.msra.mxu0 0.0
    %432 = vmatprep.subr.mxu0 0.0
    %433 = vmatpush1.msra.mxu0 0.0
    %434 = vmatprep.subr.mxu0 0.0
    %435 = vmatpush1.msra.mxu0 0.0
    %436 = vmatprep.subr.mxu0 0.0
    %437 = vmatpush1.msra.mxu0 0.0
    %438 = vmatprep.subr.mxu0 0.0
    %439 = vmatpush1.msra.mxu0 0.0
    %440 = vmatprep.subr.mxu0 0.0
    %441 = vmatpush1.msra.mxu0 0.0
    %442 = vmatprep.subr.mxu0 0.0
    %443 = vmatpush1.msra.mxu0 0.0
    %444 = vmatprep.subr.mxu0 0.0
    %445 = vmatpush1.msra.mxu0 0.0
    %446 = vmatprep.subr.mxu0 0.0
    %447 = vmatpush1.msra.mxu0 0.0
    %448 = vmatprep.subr.mxu0 0.0
    %449 = vmatpush1.msra.mxu0 0.0
    %450 = vmatprep.subr.mxu0 0.0
    %451 = vmatpush1.msra.mxu0 0.0
    %452 = vmatprep.subr.mxu0 0.0
    %453 = vmatpush1.msra.mxu0 0.0
    %454 = vmatprep.subr.mxu0 0.0
    %455 = vmatpush1.msra.mxu0 0.0
    %456 = vmatprep.subr.mxu0 0.0
    %457 = vmatpush1.msra.mxu0 0.0
    %458 = vmatprep.subr.mxu0 0.0
    %459 = vmatpush1.msra.mxu0 0.0
    %460 = vmatprep.subr.mxu0 0.0
    %461 = vmatpush1.msra.mxu0 0.0
    %462 = vmatprep.subr.mxu0 0.0
    %463 = vmatpush1.msra.mxu0 0.0
    %464 = vmatprep.subr.mxu0 0.0
    %465 = vmatpush1.msra.mxu0 0.0
    %466 = vmatprep.subr.mxu0 0.0
    %467 = vmatpush1.msra.mxu0 0.0
    %468 = vmatprep.subr.mxu0 0.0
    %469 = vmatpush1.msra.mxu0 0.0
    %470 = vmatprep.subr.mxu0 0.0
    %471 = vmatpush1.msra.mxu0 0.0
    %472 = vmatprep.subr.mxu0 0.0
    %473 = vmatpush1.msra.mxu0 0.0
    %474 = vmatprep.mubr.f32.mxu0 0.0
    %475 = vmatmul.mubr.f32.gmra.mrb[0].mxu0 %v363
    %v476 = vpop.f32.mrb[0].mxu0
    %v477 = vadd.f32 0.0, %v476
    %v478 = vpop.f32.mrb[0].mxu0
    %479 = vmatprep.mubr.f32.mxu0 0.0
    %480 = vmatmul.mubr.f32.gmra.mrb[0].mxu0 %v366
    %v481 = vpop.f32.mrb[0].mxu0
    %v482 = vadd.f32 0.0, %v481
    %v483 = vpop.f32.mrb[0].mxu0
    %484 = vmatprep.mubr.f32.mxu0 0.0
    %485 = vmatmul.mubr.f32.gmra.mrb[0].mxu0 %v369
    %v486 = vpop.f32.mrb[0].mxu0
    %v487 = vadd.f32 0.0, %v486
    %v488 = vpop.f32.mrb[0].mxu0
    %489 = vmatprep.mubr.f32.mxu0 0.0
    %490 = vmatmul.mubr.f32.gmra.mrb[0].mxu0 %v372
    %v491 = vpop.f32.mrb[0].mxu0
    %v492 = vadd.f32 0.0, %v491
    %v493 = vpop.f32.mrb[0].mxu0
    %494 = vmatprep.mubr.f32.mxu0 0.0
    %495 = vmatmul.mubr.f32.gmra.mrb[0].mxu0 %v375
    %v496 = vpop.f32.mrb[0].mxu0
    %v497 = vadd.f32 0.0, %v496
    %v498 = vpop.f32.mrb[0].mxu0
    %499 = vmatprep.mubr.f32.mxu0 0.0
    %500 = vmatmul.mubr.f32.gmra.mrb[0].mxu0 %v378
    %v501 = vpop.f32.mrb[0].mxu0
    %v502 = vadd.f32 0.0, %v501
    %v503 = vpop.f32.mrb[0].mxu0
    %504 = vmatprep.mubr.f32.mxu0 0.0
    %505 = vmatmul.mubr.f32.gmra.mrb[0].mxu0 %v381
    %v506 = vpop.f32.mrb[0].mxu0
    %v507 = vadd.f32 0.0, %v506
    %v508 = vpop.f32.mrb[0].mxu0
    %509 = vmatprep.mubr.f32.mxu0 0.0
    %510 = vmatmul.mubr.f32.gmra.mrb[0].mxu0 %v384
    %v511 = vpop.f32.mrb[0].mxu0
    %v512 = vadd.f32 0.0, %v511
    %v513 = vpop.f32.mrb[0].mxu0
    %514 = vmatprep.mubr.f32.mxu0 0.0
    %515 = vmatmul.mubr.f32.gmra.mrb[0].mxu0 %v387
    %v516 = vpop.f32.mrb[0].mxu0
    %v517 = vadd.f32 0.0, %v516
    %v518 = vpop.f32.mrb[0].mxu0
    %519 = vmatprep.mubr.f32.mxu0 0.0
    %520 = vmatmul.mubr.f32.gmra.mrb[0].mxu0 %v390
    %v521 = vpop.f32.mrb[0].mxu0
    %v522 = vadd.f32 0.0, %v521
    %v523 = vpop.f32.mrb[0].mxu0
    %524 = vmatprep.mubr.f32.mxu0 0.0
    %525 = vmatmul.mubr.f32.gmra.mrb[0].mxu0 %v393
    %v526 = vpop.f32.mrb[0].mxu0
    %v527 = vadd.f32 0.0, %v526
    %v528 = vpop.f32.mrb[0].mxu0
    %529 = vmatprep.mubr.f32.mxu0 0.0
    %530 = vmatmul.mubr.f32.gmra.mrb[0].mxu0 %v396
    %v531 = vpop.f32.mrb[0].mxu0
    %v532 = vadd.f32 0.0, %v531
    %v533 = vpop.f32.mrb[0].mxu0
    %534 = vmatprep.mubr.f32.mxu0 0.0
    %535 = vmatmul.mubr.f32.gmra.mrb[0].mxu0 %v399
    %v536 = vpop.f32.mrb[0].mxu0
    %v537 = vadd.f32 0.0, %v536
    %v538 = vpop.f32.mrb[0].mxu0
    %539 = vmatprep.mubr.f32.mxu0 0.0
    %540 = vmatmul.mubr.f32.gmra.mrb[0].mxu0 %v402
    %v541 = vpop.f32.mrb[0].mxu0
    %v542 = vadd.f32 0.0, %v541
    %v543 = vpop.f32.mrb[0].mxu0
    %544 = vmatprep.mubr.f32.mxu0 0.0
    %545 = vmatmul.mubr.f32.gmra.mrb[0].mxu0 %v405
    %v546 = vpop.f32.mrb[0].mxu0
    %v547 = vadd.f32 0.0, %v546
    %v548 = vpop.f32.mrb[0].mxu0
    %549 = vmatprep.mubr.f32.mxu0 0.0
    %550 = vmatmul.mubr.f32.gmra.mrb[0].mxu0 %v408
    %v551 = vpop.f32.mrb[0].mxu0
    %v552 = vadd.f32 0.0, %v551
    %v553 = vpop.f32.mrb[0].mxu0
    %554 = vdwg.mxu0
    %v555 = vmul.f32 %v477, %v345
    %v556 = vmul.f32 %v482, %v346
    %v557 = vmul.f32 %v487, %v347
    %v558 = vmul.f32 %v492, %v348
    %v559 = vmul.f32 %v497, %v349
    %v560 = vmul.f32 %v502, %v350
    %v561 = vmul.f32 %v507, %v351
    %v562 = vmul.f32 %v512, %v352
    %v563 = vmul.f32 %v517, %v353
    %v564 = vmul.f32 %v522, %v354
    %v565 = vmul.f32 %v527, %v355
    %v566 = vmul.f32 %v532, %v356
    %v567 = vmul.f32 %v537, %v357
    %v568 = vmul.f32 %v542, %v358
    %v569 = vmul.f32 %v547, %v359
    %v570 = vmul.f32 %v552, %v360
    %571 = vmatprep.subr.mxu0 0.0
    %572 = vmatpush1.msra.mxu0 %v321
    %573 = vmatprep.subr.mxu0 0.0
    %574 = vmatpush1.msra.mxu0 %v326
    %575 = vmatprep.subr.mxu0 0.0
    %576 = vmatpush1.msra.mxu0 0.0
    %577 = vmatprep.subr.mxu0 0.0
    %578 = vmatpush1.msra.mxu0 0.0
    %579 = vmatprep.subr.mxu0 0.0
    %580 = vmatpush1.msra.mxu0 0.0
    %581 = vmatprep.subr.mxu0 0.0
    %582 = vmatpush1.msra.mxu0 0.0
    %583 = vmatprep.subr.mxu0 0.0
    %584 = vmatpush1.msra.mxu0 0.0
    %585 = vmatprep.subr.mxu0 0.0
    %586 = vmatpush1.msra.mxu0 0.0
    %587 = vmatprep.subr.mxu0 0.0
    %588 = vmatpush1.msra.mxu0 0.0
    %589 = vmatprep.subr.mxu0 0.0
    %590 = vmatpush1.msra.mxu0 0.0
    %591 = vmatprep.subr.mxu0 0.0
    %592 = vmatpush1.msra.mxu0 0.0
    %593 = vmatprep.subr.mxu0 0.0
    %594 = vmatpush1.msra.mxu0 0.0
    %595 = vmatprep.subr.mxu0 0.0
    %596 = vmatpush1.msra.mxu0 0.0
    %597 = vmatprep.subr.mxu0 0.0
    %598 = vmatpush1.msra.mxu0 0.0
    %599 = vmatprep.subr.mxu0 0.0
    %600 = vmatpush1.msra.mxu0 0.0
    %601 = vmatprep.subr.mxu0 0.0
    %602 = vmatpush1.msra.mxu0 0.0
    %603 = vmatprep.subr.mxu0 0.0
    %604 = vmatpush1.msra.mxu0 0.0
    %605 = vmatprep.subr.mxu0 0.0
    %606 = vmatpush1.msra.mxu0 0.0
    %607 = vmatprep.subr.mxu0 0.0
    %608 = vmatpush1.msra.mxu0 0.0
    %609 = vmatprep.subr.mxu0 0.0
    %610 = vmatpush1.msra.mxu0 0.0
    %611 = vmatprep.subr.mxu0 0.0
    %612 = vmatpush1.msra.mxu0 0.0
    %613 = vmatprep.subr.mxu0 0.0
    %614 = vmatpush1.msra.mxu0 0.0
    %615 = vmatprep.subr.mxu0 0.0
    %616 = vmatpush1.msra.mxu0 0.0
    %617 = vmatprep.subr.mxu0 0.0
    %618 = vmatpush1.msra.mxu0 0.0
    %619 = vmatprep.subr.mxu0 0.0
    %620 = vmatpush1.msra.mxu0 0.0
    %621 = vmatprep.subr.mxu0 0.0
    %622 = vmatpush1.msra.mxu0 0.0
    %623 = vmatprep.subr.mxu0 0.0
    %624 = vmatpush1.msra.mxu0 0.0
    %625 = vmatprep.subr.mxu0 0.0
    %626 = vmatpush1.msra.mxu0 0.0
    %627 = vmatprep.subr.mxu0 0.0
    %628 = vmatpush1.msra.mxu0 0.0
    %629 = vmatprep.subr.mxu0 0.0
    %630 = vmatpush1.msra.mxu0 0.0
    %631 = vmatprep.subr.mxu0 0.0
    %632 = vmatpush1.msra.mxu0 0.0
    %633 = vmatprep.subr.mxu0 0.0
    %634 = vmatpush1.msra.mxu0 0.0
    %635 = vmatprep.mubr.f32.mxu0 0.0
    %636 = vmatmul.mubr.f32.gmra.mrb[0].mxu0 %v363
    %v637 = vpop.f32.mrb[0].mxu0
    %v638 = vadd.f32 0.0, %v637
    %v639 = vpop.f32.mrb[0].mxu0
    %640 = vmatprep.mubr.f32.mxu0 0.0
    %641 = vmatmul.mubr.f32.gmra.mrb[0].mxu0 %v366
    %v642 = vpop.f32.mrb[0].mxu0
    %v643 = vadd.f32 0.0, %v642
    %v644 = vpop.f32.mrb[0].mxu0
    %645 = vmatprep.mubr.f32.mxu0 0.0
    %646 = vmatmul.mubr.f32.gmra.mrb[0].mxu0 %v369
    %v647 = vpop.f32.mrb[0].mxu0
    %v648 = vadd.f32 0.0, %v647
    %v649 = vpop.f32.mrb[0].mxu0
    %650 = vmatprep.mubr.f32.mxu0 0.0
    %651 = vmatmul.mubr.f32.gmra.mrb[0].mxu0 %v372
    %v652 = vpop.f32.mrb[0].mxu0
    %v653 = vadd.f32 0.0, %v652
    %v654 = vpop.f32.mrb[0].mxu0
    %655 = vmatprep.mubr.f32.mxu0 0.0
    %656 = vmatmul.mubr.f32.gmra.mrb[0].mxu0 %v375
    %v657 = vpop.f32.mrb[0].mxu0
    %v658 = vadd.f32 0.0, %v657
    %v659 = vpop.f32.mrb[0].mxu0
    %660 = vmatprep.mubr.f32.mxu0 0.0
    %661 = vmatmul.mubr.f32.gmra.mrb[0].mxu0 %v378
    %v662 = vpop.f32.mrb[0].mxu0
    %v663 = vadd.f32 0.0, %v662
    %v664 = vpop.f32.mrb[0].mxu0
    %665 = vmatprep.mubr.f32.mxu0 0.0
    %666 = vmatmul.mubr.f32.gmra.mrb[0].mxu0 %v381
    %v667 = vpop.f32.mrb[0].mxu0
    %v668 = vadd.f32 0.0, %v667
    %v669 = vpop.f32.mrb[0].mxu0
    %670 = vmatprep.mubr.f32.mxu0 0.0
    %671 = vmatmul.mubr.f32.gmra.mrb[0].mxu0 %v384
    %v672 = vpop.f32.mrb[0].mxu0
    %v673 = vadd.f32 0.0, %v672
    %v674 = vpop.f32.mrb[0].mxu0
    %675 = vmatprep.mubr.f32.mxu0 0.0
    %676 = vmatmul.mubr.f32.gmra.mrb[0].mxu0 %v387
    %v677 = vpop.f32.mrb[0].mxu0
    %v678 = vadd.f32 0.0, %v677
    %v679 = vpop.f32.mrb[0].mxu0
    %680 = vmatprep.mubr.f32.mxu0 0.0
    %681 = vmatmul.mubr.f32.gmra.mrb[0].mxu0 %v390
    %v682 = vpop.f32.mrb[0].mxu0
    %v683 = vadd.f32 0.0, %v682
    %v684 = vpop.f32.mrb[0].mxu0
    %685 = vmatprep.mubr.f32.mxu0 0.0
    %686 = vmatmul.mubr.f32.gmra.mrb[0].mxu0 %v393
    %v687 = vpop.f32.mrb[0].mxu0
    %v688 = vadd.f32 0.0, %v687
    %v689 = vpop.f32.mrb[0].mxu0
    %690 = vmatprep.mubr.f32.mxu0 0.0
    %691 = vmatmul.mubr.f32.gmra.mrb[0].mxu0 %v396
    %v692 = vpop.f32.mrb[0].mxu0
    %v693 = vadd.f32 0.0, %v692
    %v694 = vpop.f32.mrb[0].mxu0
    %695 = vmatprep.mubr.f32.mxu0 0.0
    %696 = vmatmul.mubr.f32.gmra.mrb[0].mxu0 %v399
    %v697 = vpop.f32.mrb[0].mxu0
    %v698 = vadd.f32 0.0, %v697
    %v699 = vpop.f32.mrb[0].mxu0
    %700 = vmatprep.mubr.f32.mxu0 0.0
    %701 = vmatmul.mubr.f32.gmra.mrb[0].mxu0 %v402
    %v702 = vpop.f32.mrb[0].mxu0
    %v703 = vadd.f32 0.0, %v702
    %v704 = vpop.f32.mrb[0].mxu0
    %705 = vmatprep.mubr.f32.mxu0 0.0
    %706 = vmatmul.mubr.f32.gmra.mrb[0].mxu0 %v405
    %v707 = vpop.f32.mrb[0].mxu0
    %v708 = vadd.f32 0.0, %v707
    %v709 = vpop.f32.mrb[0].mxu0
    %710 = vmatprep.mubr.f32.mxu0 0.0
    %711 = vmatmul.mubr.f32.gmra.mrb[0].mxu0 %v408
    %v712 = vpop.f32.mrb[0].mxu0
    %v713 = vadd.f32 0.0, %v712
    %v714 = vpop.f32.mrb[0].mxu0
    %715 = vdwg.mxu0
    %v716 = vmul.f32 %v638, %v345
    %v717 = vmul.f32 %v643, %v346
    %v718 = vmul.f32 %v648, %v347
    %v719 = vmul.f32 %v653, %v348
    %v720 = vmul.f32 %v658, %v349
    %v721 = vmul.f32 %v663, %v350
    %v722 = vmul.f32 %v668, %v351
    %v723 = vmul.f32 %v673, %v352
    %v724 = vmul.f32 %v678, %v353
    %v725 = vmul.f32 %v683, %v354
    %v726 = vmul.f32 %v688, %v355
    %v727 = vmul.f32 %v693, %v356
    %v728 = vmul.f32 %v698, %v357
    %v729 = vmul.f32 %v703, %v358
    %v730 = vmul.f32 %v708, %v359
    %v731 = vmul.f32 %v713, %v360
    %v732 = vld [vmem:[#allocation4 + $0x340] sm:$0xff]
    %v733 = vld [vmem:[#allocation4 + $0x348] sm:$0xff]
    %vm734 = vcmask 261120
    %v736 = vsel %vm734, %v163, 0
    %v739 = vsel %vm734, %v168, 0
    %v742 = vsel %vm734, %v555, 0
    %v745 = vsel %vm734, %v556, 0
    %v748 = vsel %vm734, %v557, 0
    %v751 = vsel %vm734, %v558, 0
    %v754 = vsel %vm734, %v559, 0
    %v757 = vsel %vm734, %v560, 0
    %v760 = vsel %vm734, %v561, 0
    %v763 = vsel %vm734, %v562, 0
    %v766 = vsel %vm734, %v563, 0
    %v769 = vsel %vm734, %v564, 0
    %v772 = vsel %vm734, %v565, 0
    %v775 = vsel %vm734, %v566, 0
    %v778 = vsel %vm734, %v567, 0
    %v781 = vsel %vm734, %v568, 0
    %v784 = vsel %vm734, %v569, 0
    %v787 = vsel %vm734, %v570, 0
    %789 = vmatprep.subr.mxu0 0.0
    %790 = vmatpush1.xpose.msra.mxu0 %v742
    %791 = vmatprep.subr.mxu0 0.0
    %792 = vmatpush1.xpose.msra.mxu0 %v745
    %793 = vmatprep.subr.mxu0 0.0
    %794 = vmatpush1.xpose.msra.mxu0 %v748
    %795 = vmatprep.subr.mxu0 0.0
    %796 = vmatpush1.xpose.msra.mxu0 %v751
    %797 = vmatprep.subr.mxu0 0.0
    %798 = vmatpush1.xpose.msra.mxu0 %v754
    %799 = vmatprep.subr.mxu0 0.0
    %800 = vmatpush1.xpose.msra.mxu0 %v757
    %801 = vmatprep.subr.mxu0 0.0
    %802 = vmatpush1.xpose.msra.mxu0 %v760
    %803 = vmatprep.subr.mxu0 0.0
    %804 = vmatpush1.xpose.msra.mxu0 %v763
    %805 = vmatprep.subr.mxu0 0.0
    %806 = vmatpush1.xpose.msra.mxu0 %v766
    %807 = vmatprep.subr.mxu0 0.0
    %808 = vmatpush1.xpose.msra.mxu0 %v769
    %809 = vmatprep.subr.mxu0 0.0
    %810 = vmatpush1.xpose.msra.mxu0 %v772
    %811 = vmatprep.subr.mxu0 0.0
    %812 = vmatpush1.xpose.msra.mxu0 %v775
    %813 = vmatprep.subr.mxu0 0.0
    %814 = vmatpush1.xpose.msra.mxu0 %v778
    %815 = vmatprep.subr.mxu0 0.0
    %816 = vmatpush1.xpose.msra.mxu0 %v781
    %817 = vmatprep.subr.mxu0 0.0
    %818 = vmatpush1.xpose.msra.mxu0 %v784
    %819 = vmatprep.subr.mxu0 0.0
    %820 = vmatpush1.xpose.msra.mxu0 %v787
    %821 = vmatprep.subr.mxu0 0.0
    %822 = vmatpush1.xpose.msra.mxu0 0.0
    %823 = vmatprep.subr.mxu0 0.0
    %824 = vmatpush1.xpose.msra.mxu0 0.0
    %825 = vmatprep.subr.mxu0 0.0
    %826 = vmatpush1.xpose.msra.mxu0 0.0
    %827 = vmatprep.subr.mxu0 0.0
    %828 = vmatpush1.xpose.msra.mxu0 0.0
    %829 = vmatprep.subr.mxu0 0.0
    %830 = vmatpush1.xpose.msra.mxu0 0.0
    %831 = vmatprep.subr.mxu0 0.0
    %832 = vmatpush1.xpose.msra.mxu0 0.0
    %833 = vmatprep.subr.mxu0 0.0
    %834 = vmatpush1.xpose.msra.mxu0 0.0
    %835 = vmatprep.subr.mxu0 0.0
    %836 = vmatpush1.xpose.msra.mxu0 0.0
    %837 = vmatprep.subr.mxu0 0.0
    %838 = vmatpush1.xpose.msra.mxu0 0.0
    %839 = vmatprep.subr.mxu0 0.0
    %840 = vmatpush1.xpose.msra.mxu0 0.0
    %841 = vmatprep.subr.mxu0 0.0
    %842 = vmatpush1.xpose.msra.mxu0 0.0
    %843 = vmatprep.subr.mxu0 0.0
    %844 = vmatpush1.xpose.msra.mxu0 0.0
    %845 = vmatprep.subr.mxu0 0.0
    %846 = vmatpush1.xpose.msra.mxu0 0.0
    %847 = vmatprep.subr.mxu0 0.0
    %848 = vmatpush1.xpose.msra.mxu0 0.0
    %849 = vmatprep.subr.mxu0 0.0
    %850 = vmatpush1.xpose.msra.mxu0 0.0
    %851 = vmatprep.subr.mxu0 0.0
    %852 = vmatpush1.xpose.msra.mxu0 0.0
    %853 = vmatprep.mubr.f32.mxu0 0.0
    %854 = vmatmul.mubr.f32.gmra.mrb[0].mxu0 %v736
    %v855 = vpop.f32.mrb[0].mxu0
    %v856 = vadd.f32 %v732, %v855
    %v857 = vpop.f32.mrb[0].mxu0
    %858 = vmatprep.mubr.f32.mxu0 0.0
    %859 = vmatmul.mubr.f32.gmra.mrb[0].mxu0 %v739
    %v860 = vpop.f32.mrb[0].mxu0
    %v861 = vadd.f32 %v733, %v860
    %v862 = vpop.f32.mrb[0].mxu0
    %863 = vdwg.mxu0
    %864 = vmax.xlane.f32.xlu0 %v856
    %v865 = vpop.xlane.xlu0 %864
    %866 = vmax.xlane.f32.xlu0 %v861
    %v867 = vpop.xlane.xlu0 %866
    %v868 = vsub.f32 %v856, %v865
    %v869 = vsub.f32 %v861, %v867
    %v870 = vmul.f32 %v868, 1.442695
    %v871 = vpow.pop %v870
    %v872 = vmul.f32 %v869, 1.442695
    %v873 = vpow.pop %v872
    %v874 = vld [vmem:[#allocation4 + $0x280] sm:$0xff]
    %v875 = vld [vmem:[#allocation4 + $0x288] sm:$0xff]
    %v876 = vld [vmem:[#allocation4 + $0x290] sm:$0xff]
    %v877 = vld [vmem:[#allocation4 + $0x298] sm:$0xff]
    %v878 = vld [vmem:[#allocation4 + $0x2a0] sm:$0xff]
    %v879 = vld [vmem:[#allocation4 + $0x2a8] sm:$0xff]
    %v880 = vld [vmem:[#allocation4 + $0x2b0] sm:$0xff]
    %v881 = vld [vmem:[#allocation4 + $0x2b8] sm:$0xff]
    %v882 = vld [vmem:[#allocation4 + $0x2c0] sm:$0xff]
    %v883 = vld [vmem:[#allocation4 + $0x2c8] sm:$0xff]
    %v884 = vld [vmem:[#allocation4 + $0x2d0] sm:$0xff]
    %v885 = vld [vmem:[#allocation4 + $0x2d8] sm:$0xff]
    %v886 = vld [vmem:[#allocation4 + $0x2e0] sm:$0xff]
    %v887 = vld [vmem:[#allocation4 + $0x2e8] sm:$0xff]
    %v888 = vld [vmem:[#allocation4 + $0x2f0] sm:$0xff]
    %v889 = vld [vmem:[#allocation4 + $0x2f8] sm:$0xff]
    %890 = vmatprep.subr.mxu0 0.0
    %891 = vmatpush1.msra.mxu0 %v874
    %892 = vmatprep.subr.mxu0 0.0
    %893 = vmatpush1.msra.mxu0 %v875
    %894 = vmatprep.subr.mxu0 0.0
    %895 = vmatpush1.msra.mxu0 %v876
    %896 = vmatprep.subr.mxu0 0.0
    %897 = vmatpush1.msra.mxu0 %v877
    %898 = vmatprep.subr.mxu0 0.0
    %899 = vmatpush1.msra.mxu0 %v878
    %900 = vmatprep.subr.mxu0 0.0
    %901 = vmatpush1.msra.mxu0 %v879
    %902 = vmatprep.subr.mxu0 0.0
    %903 = vmatpush1.msra.mxu0 %v880
    %904 = vmatprep.subr.mxu0 0.0
    %905 = vmatpush1.msra.mxu0 %v881
    %906 = vmatprep.subr.mxu0 0.0
    %907 = vmatpush1.msra.mxu0 %v882
    %908 = vmatprep.subr.mxu0 0.0
    %909 = vmatpush1.msra.mxu0 %v883
    %910 = vmatprep.subr.mxu0 0.0
    %911 = vmatpush1.msra.mxu0 %v884
    %912 = vmatprep.subr.mxu0 0.0
    %913 = vmatpush1.msra.mxu0 %v885
    %914 = vmatprep.subr.mxu0 0.0
    %915 = vmatpush1.msra.mxu0 %v886
    %916 = vmatprep.subr.mxu0 0.0
    %917 = vmatpush1.msra.mxu0 %v887
    %918 = vmatprep.subr.mxu0 0.0
    %919 = vmatpush1.msra.mxu0 %v888
    %920 = vmatprep.subr.mxu0 0.0
    %921 = vmatpush1.msra.mxu0 %v889
    %922 = vmatprep.subr.mxu0 0.0
    %923 = vmatpush1.msra.mxu0 0.0
    %924 = vmatprep.subr.mxu0 0.0
    %925 = vmatpush1.msra.mxu0 0.0
    %926 = vmatprep.subr.mxu0 0.0
    %927 = vmatpush1.msra.mxu0 0.0
    %928 = vmatprep.subr.mxu0 0.0
    %929 = vmatpush1.msra.mxu0 0.0
    %930 = vmatprep.subr.mxu0 0.0
    %931 = vmatpush1.msra.mxu0 0.0
    %932 = vmatprep.subr.mxu0 0.0
    %933 = vmatpush1.msra.mxu0 0.0
    %934 = vmatprep.subr.mxu0 0.0
    %935 = vmatpush1.msra.mxu0 0.0
    %936 = vmatprep.subr.mxu0 0.0
    %937 = vmatpush1.msra.mxu0 0.0
    %938 = vmatprep.subr.mxu0 0.0
    %939 = vmatpush1.msra.mxu0 0.0
    %940 = vmatprep.subr.mxu0 0.0
    %941 = vmatpush1.msra.mxu0 0.0
    %942 = vmatprep.subr.mxu0 0.0
    %943 = vmatpush1.msra.mxu0 0.0
    %944 = vmatprep.subr.mxu0 0.0
    %945 = vmatpush1.msra.mxu0 0.0
    %946 = vmatprep.subr.mxu0 0.0
    %947 = vmatpush1.msra.mxu0 0.0
    %948 = vmatprep.subr.mxu0 0.0
    %949 = vmatpush1.msra.mxu0 0.0
    %950 = vmatprep.subr.mxu0 0.0
    %951 = vmatpush1.msra.mxu0 0.0
    %952 = vmatprep.subr.mxu0 0.0
    %953 = vmatpush1.msra.mxu0 0.0
    %954 = vmatprep.mubr.f32.mxu0 0.0
    %955 = vmatmul.mubr.f32.gmra.mrb[0].mxu0 %v871
    %v956 = vpop.f32.mrb[0].mxu0
    %v957 = vadd.f32 0.0, %v956
    %v958 = vpop.f32.mrb[0].mxu0
    %959 = vmatprep.mubr.f32.mxu0 0.0
    %960 = vmatmul.mubr.f32.gmra.mrb[0].mxu0 %v873
    %v961 = vpop.f32.mrb[0].mxu0
    %v962 = vadd.f32 0.0, %v961
    %v963 = vpop.f32.mrb[0].mxu0
    %964 = vdwg.mxu0
    %v965 = vmax.f32 %v957, 1e-30
    %v966 = vmax.f32 %v962, 1e-30
    %v967 = vrcp.pop %v965
    %v968 = vrcp.pop %v966
    %v969 = vmul.f32 %v965, %v967
    %v970 = vmul.f32 %v966, %v968
    %v971 = vsub.f32 2.0, %v969
    %v972 = vsub.f32 2.0, %v970
    %v973 = vmul.f32 %v967, %v971
    %v974 = vmul.f32 %v968, %v972
    %v975 = vmul.f32 %v871, %v973
    %v976 = vmul.f32 %v873, %v974
    %977 = vmatprep.subr.mxu0 0.0
    %978 = vmatpush1.msra.mxu0 %v716
    %979 = vmatprep.subr.mxu0 0.0
    %980 = vmatpush1.msra.mxu0 %v717
    %981 = vmatprep.subr.mxu0 0.0
    %982 = vmatpush1.msra.mxu0 %v718
    %983 = vmatprep.subr.mxu0 0.0
    %984 = vmatpush1.msra.mxu0 %v719
    %985 = vmatprep.subr.mxu0 0.0
    %986 = vmatpush1.msra.mxu0 %v720
    %987 = vmatprep.subr.mxu0 0.0
    %988 = vmatpush1.msra.mxu0 %v721
    %989 = vmatprep.subr.mxu0 0.0
    %990 = vmatpush1.msra.mxu0 %v722
    %991 = vmatprep.subr.mxu0 0.0
    %992 = vmatpush1.msra.mxu0 %v723
    %993 = vmatprep.subr.mxu0 0.0
    %994 = vmatpush1.msra.mxu0 %v724
    %995 = vmatprep.subr.mxu0 0.0
    %996 = vmatpush1.msra.mxu0 %v725
    %997 = vmatprep.subr.mxu0 0.0
    %998 = vmatpush1.msra.mxu0 %v726
    %999 = vmatprep.subr.mxu0 0.0
    %1000 = vmatpush1.msra.mxu0 %v727
    %1001 = vmatprep.subr.mxu0 0.0
    %1002 = vmatpush1.msra.mxu0 %v728
    %1003 = vmatprep.subr.mxu0 0.0
    %1004 = vmatpush1.msra.mxu0 %v729
    %1005 = vmatprep.subr.mxu0 0.0
    %1006 = vmatpush1.msra.mxu0 %v730
    %1007 = vmatprep.subr.mxu0 0.0
    %1008 = vmatpush1.msra.mxu0 %v731
    %1009 = vmatprep.subr.mxu0 0.0
    %1010 = vmatpush1.msra.mxu0 0.0
    %1011 = vmatprep.subr.mxu0 0.0
    %1012 = vmatpush1.msra.mxu0 0.0
    %1013 = vmatprep.subr.mxu0 0.0
    %1014 = vmatpush1.msra.mxu0 0.0
    %1015 = vmatprep.subr.mxu0 0.0
    %1016 = vmatpush1.msra.mxu0 0.0
    %1017 = vmatprep.subr.mxu0 0.0
    %1018 = vmatpush1.msra.mxu0 0.0
    %1019 = vmatprep.subr.mxu0 0.0
    %1020 = vmatpush1.msra.mxu0 0.0
    %1021 = vmatprep.subr.mxu0 0.0
    %1022 = vmatpush1.msra.mxu0 0.0
    %1023 = vmatprep.subr.mxu0 0.0
    %1024 = vmatpush1.msra.mxu0 0.0
    %1025 = vmatprep.subr.mxu0 0.0
    %1026 = vmatpush1.msra.mxu0 0.0
    %1027 = vmatprep.subr.mxu0 0.0
    %1028 = vmatpush1.msra.mxu0 0.0
    %1029 = vmatprep.subr.mxu0 0.0
    %1030 = vmatpush1.msra.mxu0 0.0
    %1031 = vmatprep.subr.mxu0 0.0
    %1032 = vmatpush1.msra.mxu0 0.0
    %1033 = vmatprep.subr.mxu0 0.0
    %1034 = vmatpush1.msra.mxu0 0.0
    %1035 = vmatprep.subr.mxu0 0.0
    %1036 = vmatpush1.msra.mxu0 0.0
    %1037 = vmatprep.subr.mxu0 0.0
    %1038 = vmatpush1.msra.mxu0 0.0
    %1039 = vmatprep.subr.mxu0 0.0
    %1040 = vmatpush1.msra.mxu0 0.0
    %1041 = vmatprep.mubr.f32.mxu0 0.0
    %1042 = vmatmul.mubr.f32.gmra.mrb[0].mxu0 %v975
    %v1043 = vpop.f32.mrb[0].mxu0
    %v1044 = vadd.f32 0.0, %v1043
    %v1045 = vpop.f32.mrb[0].mxu0
    %1046 = vmatprep.mubr.f32.mxu0 0.0
    %1047 = vmatmul.mubr.f32.gmra.mrb[0].mxu0 %v976
    %v1048 = vpop.f32.mrb[0].mxu0
    %v1049 = vadd.f32 0.0, %v1048
    %v1050 = vpop.f32.mrb[0].mxu0
    %1051 = vdwg.mxu0
    %v1052 = vld [vmem:[#allocation4 + $0x300] sm:$0xff]
    %v1053 = vld [vmem:[#allocation4 + $0x308] sm:$0xff]
    %v1054 = vld [vmem:[#allocation4 + $0x310] sm:$0xff]
    %v1055 = vld [vmem:[#allocation4 + $0x318] sm:$0xff]
    %v1056 = vld [vmem:[#allocation4 + $0x353] sm:$0x1]
    %v1057 = vlaneseq
    %v1058 = vshrl.u32 %v1057, 7
    %v1059 = vsub.s32 0, %v1058
    %v1060 = vrot.slane %v1056, %v1059
    %v1062 = vsel %vm734, %v1044, 0
    %v1065 = vsel %vm734, %v1049, 0
    %1067 = vmatprep.subr.mxu0 0.0
    %1068 = vmatpush1.msra.mxu0 %v1052
    %1069 = vmatprep.subr.mxu0 0.0
    %1070 = vmatpush1.msra.mxu0 %v1053
    %1071 = vmatprep.subr.mxu0 0.0
    %1072 = vmatpush1.msra.mxu0 %v1054
    %1073 = vmatprep.subr.mxu0 0.0
    %1074 = vmatpush1.msra.mxu0 %v1055
    %1075 = vmatprep.subr.mxu0 0.0
    %1076 = vmatpush1.msra.mxu0 0.0
    %1077 = vmatprep.subr.mxu0 0.0
    %1078 = vmatpush1.msra.mxu0 0.0
    %1079 = vmatprep.subr.mxu0 0.0
    %1080 = vmatpush1.msra.mxu0 0.0
    %1081 = vmatprep.subr.mxu0 0.0
    %1082 = vmatpush1.msra.mxu0 0.0
    %1083 = vmatprep.subr.mxu0 0.0
    %1084 = vmatpush1.msra.mxu0 0.0
    %1085 = vmatprep.subr.mxu0 0.0
    %1086 = vmatpush1.msra.mxu0 0.0
    %1087 = vmatprep.subr.mxu0 0.0
    %1088 = vmatpush1.msra.mxu0 0.0
    %1089 = vmatprep.subr.mxu0 0.0
    %1090 = vmatpush1.msra.mxu0 0.0
    %1091 = vmatprep.subr.mxu0 0.0
    %1092 = vmatpush1.msra.mxu0 0.0
    %1093 = vmatprep.subr.mxu0 0.0
    %1094 = vmatpush1.msra.mxu0 0.0
    %1095 = vmatprep.subr.mxu0 0.0
    %1096 = vmatpush1.msra.mxu0 0.0
    %1097 = vmatprep.subr.mxu0 0.0
    %1098 = vmatpush1.msra.mxu0 0.0
    %1099 = vmatprep.subr.mxu0 0.0
    %1100 = vmatpush1.msra.mxu0 0.0
    %1101 = vmatprep.subr.mxu0 0.0
    %1102 = vmatpush1.msra.mxu0 0.0
    %1103 = vmatprep.subr.mxu0 0.0
    %1104 = vmatpush1.msra.mxu0 0.0
    %1105 = vmatprep.subr.mxu0 0.0
    %1106 = vmatpush1.msra.mxu0 0.0
    %1107 = vmatprep.subr.mxu0 0.0
    %1108 = vmatpush1.msra.mxu0 0.0
    %1109 = vmatprep.subr.mxu0 0.0
    %1110 = vmatpush1.msra.mxu0 0.0
    %1111 = vmatprep.subr.mxu0 0.0
    %1112 = vmatpush1.msra.mxu0 0.0
    %1113 = vmatprep.subr.mxu0 0.0
    %1114 = vmatpush1.msra.mxu0 0.0
    %1115 = vmatprep.subr.mxu0 0.0
    %1116 = vmatpush1.msra.mxu0 0.0
    %1117 = vmatprep.subr.mxu0 0.0
    %1118 = vmatpush1.msra.mxu0 0.0
    %1119 = vmatprep.subr.mxu0 0.0
    %1120 = vmatpush1.msra.mxu0 0.0
    %1121 = vmatprep.subr.mxu0 0.0
    %1122 = vmatpush1.msra.mxu0 0.0
    %1123 = vmatprep.subr.mxu0 0.0
    %1124 = vmatpush1.msra.mxu0 0.0
    %1125 = vmatprep.subr.mxu0 0.0
    %1126 = vmatpush1.msra.mxu0 0.0
    %1127 = vmatprep.subr.mxu0 0.0
    %1128 = vmatpush1.msra.mxu0 0.0
    %1129 = vmatprep.subr.mxu0 0.0
    %1130 = vmatpush1.msra.mxu0 0.0
    %1131 = vmatprep.mubr.f32.mxu0 0.0
    %1132 = vmatmul.mubr.f32.gmra.mrb[0].mxu0 %v1062
    %v1133 = vpop.f32.mrb[0].mxu0
    %v1134 = vadd.f32 %v1060, %v1133
    %v1135 = vpop.f32.mrb[0].mxu0
    %1136 = vmatprep.mubr.f32.mxu0 0.0
    %1137 = vmatmul.mubr.f32.gmra.mrb[0].mxu0 %v1065
    %v1138 = vpop.f32.mrb[0].mxu0
    %v1139 = vadd.f32 %v1060, %v1138
    %v1140 = vpop.f32.mrb[0].mxu0
    %1141 = vdwg.mxu0
    %v1142 = vmax.f32 %v1134, 0.0
    %v1143 = vmax.f32 %v1139, 0.0
    %v1144 = vld [vmem:[#allocation4 + $0x320] sm:$0xff]
    %v1145 = vld [vmem:[#allocation4 + $0x328] sm:$0xff]
    %v1146 = vld [vmem:[#allocation4 + $0x330] sm:$0xff]
    %v1147 = vld [vmem:[#allocation4 + $0x338] sm:$0xff]
    %v1148 = vld [vmem:[#allocation4 + $0x354] sm:$0x1]
    %v1149 = vlaneseq
    %v1150 = vshrl.u32 %v1149, 7
    %v1151 = vsub.s32 0, %v1150
    %v1152 = vrot.slane %v1148, %v1151
    %v1154 = vsel %vm734, %v1142, 0
    %v1157 = vsel %vm734, %v1143, 0
    %1159 = vmatprep.subr.mxu0 0.0
    %1160 = vmatpush1.msra.mxu0 %v1144
    %1161 = vmatprep.subr.mxu0 0.0
    %1162 = vmatpush1.msra.mxu0 %v1145
    %1163 = vmatprep.subr.mxu0 0.0
    %1164 = vmatpush1.msra.mxu0 %v1146
    %1165 = vmatprep.subr.mxu0 0.0
    %1166 = vmatpush1.msra.mxu0 %v1147
    %1167 = vmatprep.subr.mxu0 0.0
    %1168 = vmatpush1.msra.mxu0 0.0
    %1169 = vmatprep.subr.mxu0 0.0
    %1170 = vmatpush1.msra.mxu0 0.0
    %1171 = vmatprep.subr.mxu0 0.0
    %1172 = vmatpush1.msra.mxu0 0.0
    %1173 = vmatprep.subr.mxu0 0.0
    %1174 = vmatpush1.msra.mxu0 0.0
    %1175 = vmatprep.subr.mxu0 0.0
    %1176 = vmatpush1.msra.mxu0 0.0
    %1177 = vmatprep.subr.mxu0 0.0
    %1178 = vmatpush1.msra.mxu0 0.0
    %1179 = vmatprep.subr.mxu0 0.0
    %1180 = vmatpush1.msra.mxu0 0.0
    %1181 = vmatprep.subr.mxu0 0.0
    %1182 = vmatpush1.msra.mxu0 0.0
    %1183 = vmatprep.subr.mxu0 0.0
    %1184 = vmatpush1.msra.mxu0 0.0
    %1185 = vmatprep.subr.mxu0 0.0
    %1186 = vmatpush1.msra.mxu0 0.0
    %1187 = vmatprep.subr.mxu0 0.0
    %1188 = vmatpush1.msra.mxu0 0.0
    %1189 = vmatprep.subr.mxu0 0.0
    %1190 = vmatpush1.msra.mxu0 0.0
    %1191 = vmatprep.subr.mxu0 0.0
    %1192 = vmatpush1.msra.mxu0 0.0
    %1193 = vmatprep.subr.mxu0 0.0
    %1194 = vmatpush1.msra.mxu0 0.0
    %1195 = vmatprep.subr.mxu0 0.0
    %1196 = vmatpush1.msra.mxu0 0.0
    %1197 = vmatprep.subr.mxu0 0.0
    %1198 = vmatpush1.msra.mxu0 0.0
    %1199 = vmatprep.subr.mxu0 0.0
    %1200 = vmatpush1.msra.mxu0 0.0
    %1201 = vmatprep.subr.mxu0 0.0
    %1202 = vmatpush1.msra.mxu0 0.0
    %1203 = vmatprep.subr.mxu0 0.0
    %1204 = vmatpush1.msra.mxu0 0.0
    %1205 = vmatprep.subr.mxu0 0.0
    %1206 = vmatpush1.msra.mxu0 0.0
    %1207 = vmatprep.subr.mxu0 0.0
    %1208 = vmatpush1.msra.mxu0 0.0
    %1209 = vmatprep.subr.mxu0 0.0
    %1210 = vmatpush1.msra.mxu0 0.0
    %1211 = vmatprep.subr.mxu0 0.0
    %1212 = vmatpush1.msra.mxu0 0.0
    %1213 = vmatprep.subr.mxu0 0.0
    %1214 = vmatpush1.msra.mxu0 0.0
    %1215 = vmatprep.subr.mxu0 0.0
    %1216 = vmatpush1.msra.mxu0 0.0
    %1217 = vmatprep.subr.mxu0 0.0
    %1218 = vmatpush1.msra.mxu0 0.0
    %1219 = vmatprep.subr.mxu0 0.0
    %1220 = vmatpush1.msra.mxu0 0.0
    %1221 = vmatprep.subr.mxu0 0.0
    %1222 = vmatpush1.msra.mxu0 0.0
    %1223 = vmatprep.mubr.f32.mxu0 0.0
    %1224 = vmatmul.mubr.f32.gmra.mrb[0].mxu0 %v1154
    %v1225 = vpop.f32.mrb[0].mxu0
    %v1226 = vadd.f32 %v1152, %v1225
    %v1227 = vpop.f32.mrb[0].mxu0
    %1228 = vmatprep.mubr.f32.mxu0 0.0
    %1229 = vmatmul.mubr.f32.gmra.mrb[0].mxu0 %v1157
    %v1230 = vpop.f32.mrb[0].mxu0
    %v1231 = vadd.f32 %v1152, %v1230
    %v1232 = vpop.f32.mrb[0].mxu0
    %1233 = vdwg.mxu0
    %1234 = vst [vmem:[%s2] sm:$0xff] %v1226
    %1235 = vst [vmem:[%s2 + $0x8] sm:$0xff] %v1231
    // Predicated region
    $region18: #{enhanced_projector_forward.1} parent=1 // pred_check
      _
    $region19: #{enhanced_projector_forward.1} parent=1 // pred_check_branch
      %1237 = sbr.rel (0) target = $region21
    $region20: #{enhanced_projector_forward.1} parent=1 // pred_region
      _
    $region21: #{enhanced_projector_forward.1} parent=1 // pred_fallthru
      _
    // Predicated region
    $region22: #{enhanced_projector_forward.1} parent=1 // pred_check
      _
    $region23: #{enhanced_projector_forward.1} parent=1 // pred_check_branch
      %1239 = sbr.rel (0) target = $region25
    $region24: #{enhanced_projector_forward.1} parent=1 // pred_region
      _
    $region25: #{enhanced_projector_forward.1} parent=1 // pred_fallthru
      _
    %1240 = vsyncpa [#allocation3], 1
    %1241 = vsyncpa [#allocation5], 1

</llo_original>
